<compile_context>
chip_gen: v5e
topology: v5e:2x2
jax: 0.10.0
libtpu: 0.0.40
codegen_flags: <defaults>
</compile_context>

<pallas_src>
import jax
import jax.numpy as jnp
from jax.experimental import pallas as pl
from jax.experimental.pallas import tpu as pltpu

_LANE = 128


def _linear_silu_kernel(w_ref, b_ref, x_ref, o_ref):
    """w_ref: (O*K,) f32 SMEM (row-major weight), b_ref: (O,) f32 SMEM,
    x_ref: (K, TB, 128) f32 VMEM, o_ref: (O, TB, 128) f32 VMEM."""
    K = x_ref.shape[0]
    O = o_ref.shape[0]
    for o in range(O):                         # fully unrolled: O*K dense VPU FMAs
        y = x_ref[0] * w_ref[o * K + 0]
        for k in range(1, K):
            y = y + x_ref[k] * w_ref[o * K + k]
        y = y + b_ref[o]
        # SiLU: y * sigmoid(y); exp and reciprocal both issue on the EUP slot.
        # approx=False keeps full precision (kernel is HBM-bound anyway).
        sig = pl.reciprocal(1.0 + jnp.exp(-y), approx=False)
        o_ref[o] = y * sig                     # full-width unmasked store per row


def _round_up(a, m):
    return ((a + m - 1) // m) * m


def linear_silu(x, weight, bias, *, max_blocks_per_tile=1024):
    """SiLU(F.linear(x.T, weight, bias)).

    x: (K, N) f32, weight: (O, K) f32, bias: (O,) f32 -> (N, O) f32.
    """
    K, N = x.shape
    O, K2 = weight.shape
    assert K2 == K and bias.shape == (O,)

    # ---- Tiling: sublane-dense (K, NB, 128) layout, large aligned tiles ----
    nb = pl.cdiv(N, _LANE)                      # number of 128-lane blocks
    num_tiles = max(1, pl.cdiv(nb, max_blocks_per_tile))
    if num_tiles == 1 and nb >= 16:
        num_tiles = 2                           # give both v7x TensorCores work
    if num_tiles == 1:
        tb = nb                                 # single block == full extent
    else:
        tb = _round_up(pl.cdiv(nb, num_tiles), 8)   # sublane-aligned tile
        num_tiles = pl.cdiv(nb, tb)
    nb_pad = num_tiles * tb
    n_pad = nb_pad * _LANE

    xf = x.astype(jnp.float32)
    if n_pad != N:
        xf = jnp.pad(xf, ((0, 0), (0, n_pad - N)))
    x3 = xf.reshape(K, nb_pad, _LANE)           # free row-major reshape

    grid = (num_tiles,)

    out_3d = pl.pallas_call(
        _linear_silu_kernel,
        out_shape=jax.ShapeDtypeStruct((O, nb_pad, _LANE), jnp.float32),
        grid=grid,
        in_specs=[
            pl.BlockSpec(memory_space=pltpu.MemorySpace.SMEM),        # weight (O*K,)
            pl.BlockSpec(memory_space=pltpu.MemorySpace.SMEM),        # bias (O,)
            pl.BlockSpec((K, tb, _LANE), lambda i: (0, i, 0)),        # x tile
        ],
        out_specs=pl.BlockSpec((O, tb, _LANE), lambda i: (0, i, 0)),  # lane-dense out
        compiler_params=pltpu.CompilerParams(
            dimension_semantics=("parallel",)),
    )(weight.reshape(O * K).astype(jnp.float32),
      bias.astype(jnp.float32),
      x3)

    out_on = out_3d.reshape(O, n_pad)[:, :N]    # (O, N) kernel-native layout
    # PyTorch module returns (N, O); this transpose is a second HBM pass over
    # the result — consumers that can take (O, N) should use `out_on` directly.
    return out_on.T


if __name__ == "__main__":
    key = jax.random.PRNGKey(0)
    # Note: the module's global example x = torch.randn(20, 3) is shape-
    # incompatible with its own forward (x.t() -> (3, 20) against a 3x3
    # weight), so we construct x as (in_features=3, batch=20) so that x.T
    # matches weight = eye(3).
    x = jax.random.normal(key, (3, 20), dtype=jnp.float32)
    weight = jnp.eye(3, dtype=jnp.float32)       # module: torch.eye(3)
    bias = jnp.ones((3,), dtype=jnp.float32)     # module: torch.ones(3)

    out = linear_silu(x, weight, bias)
    jax.block_until_ready(out)

    # Plain-JAX reference of the PyTorch semantics.
    v1 = x.T @ weight.T + bias
    ref = v1 * jax.nn.sigmoid(v1)
    assert out.shape == (20, 3)
    assert jnp.allclose(out, ref, atol=1e-4, rtol=1e-4), float(
        jnp.max(jnp.abs(out - ref)))

    print("KERNEL_OK")
</pallas_src>

<mosaic_0001>
module attributes {stable_mosaic.version = 11 : i64} {
  func.func @_linear_silu_kernel(%arg0: i32, %arg1: memref<9xf32, #tpu.memory_space<smem>>, %arg2: memref<3xf32, #tpu.memory_space<smem>>, %arg3: memref<3x1x128xf32, #tpu.memory_space<vmem>>, %arg4: memref<3x1x128xf32, #tpu.memory_space<vmem>>) attributes {dimension_semantics = [#tpu.dimension_semantics<parallel>], iteration_bounds = array<i64: 1>, scalar_prefetch = 0 : i64, scratch_operands = 0 : i64, tpu.core_type = #tpu.core_type<tc>, window_params = [{transform_indices = @transform_0, window_bounds = array<i64: 9>}, {transform_indices = @transform_1, window_bounds = array<i64: 3>}, {transform_indices = @transform_2, window_bounds = array<i64: 3, 1, 128>}, {transform_indices = @transform_3, window_bounds = array<i64: 3, 1, 128>}]} {
    %c0 = arith.constant 0 : index
    %c0_0 = arith.constant 0 : index
    %c0_1 = arith.constant 0 : index
    %0 = vector.load %arg3[%c0, %c0_0, %c0_1] : memref<3x1x128xf32, #tpu.memory_space<vmem>>, vector<1x1x128xf32>
    %1 = vector.shape_cast %0 : vector<1x1x128xf32> to vector<1x128xf32>
    %c0_2 = arith.constant 0 : index
    %2 = memref.load %arg1[%c0_2] : memref<9xf32, #tpu.memory_space<smem>>
    %3 = vector.broadcast %2 : f32 to vector<1x128xf32>
    %4 = arith.mulf %1, %3 : vector<1x128xf32>
    %c1 = arith.constant 1 : index
    %c0_3 = arith.constant 0 : index
    %c0_4 = arith.constant 0 : index
    %5 = vector.load %arg3[%c1, %c0_3, %c0_4] : memref<3x1x128xf32, #tpu.memory_space<vmem>>, vector<1x1x128xf32>
    %6 = vector.shape_cast %5 : vector<1x1x128xf32> to vector<1x128xf32>
    %c1_5 = arith.constant 1 : index
    %7 = memref.load %arg1[%c1_5] : memref<9xf32, #tpu.memory_space<smem>>
    %8 = vector.broadcast %7 : f32 to vector<1x128xf32>
    %9 = arith.mulf %6, %8 : vector<1x128xf32>
    %10 = arith.addf %4, %9 : vector<1x128xf32>
    %c2 = arith.constant 2 : index
    %c0_6 = arith.constant 0 : index
    %c0_7 = arith.constant 0 : index
    %11 = vector.load %arg3[%c2, %c0_6, %c0_7] : memref<3x1x128xf32, #tpu.memory_space<vmem>>, vector<1x1x128xf32>
    %12 = vector.shape_cast %11 : vector<1x1x128xf32> to vector<1x128xf32>
    %c2_8 = arith.constant 2 : index
    %13 = memref.load %arg1[%c2_8] : memref<9xf32, #tpu.memory_space<smem>>
    %14 = vector.broadcast %13 : f32 to vector<1x128xf32>
    %15 = arith.mulf %12, %14 : vector<1x128xf32>
    %16 = arith.addf %10, %15 : vector<1x128xf32>
    %c0_9 = arith.constant 0 : index
    %17 = memref.load %arg2[%c0_9] : memref<3xf32, #tpu.memory_space<smem>>
    %18 = vector.broadcast %17 : f32 to vector<1x128xf32>
    %19 = arith.addf %16, %18 : vector<1x128xf32>
    %cst = arith.constant 0.000000e+00 : f32
    %20 = vector.broadcast %cst : f32 to vector<1x128xf32>
    %21 = arith.subf %20, %19 : vector<1x128xf32>
    %22 = math.exp %21 : vector<1x128xf32>
    %cst_10 = arith.constant 1.000000e+00 : f32
    %23 = vector.broadcast %cst_10 : f32 to vector<1x128xf32>
    %24 = arith.addf %23, %22 : vector<1x128xf32>
    %25 = tpu.reciprocal %24 : vector<1x128xf32> -> vector<1x128xf32>
    %26 = arith.mulf %19, %25 : vector<1x128xf32>
    %c0_11 = arith.constant 0 : index
    %c0_12 = arith.constant 0 : index
    %c0_13 = arith.constant 0 : index
    %27 = vector.load %arg4[%c0_11, %c0_12, %c0_13] : memref<3x1x128xf32, #tpu.memory_space<vmem>>, vector<1x1x128xf32>
    %28 = vector.shape_cast %27 : vector<1x1x128xf32> to vector<1x128xf32>
    %29 = vector.shape_cast %26 : vector<1x128xf32> to vector<1x1x128xf32>
    tpu.vector_store %arg4[%c0_11, %c0_12, %c0_13], %29 {strides = array<i32>} : memref<3x1x128xf32, #tpu.memory_space<vmem>>, vector<1x1x128xf32>,
    %c0_14 = arith.constant 0 : index
    %c0_15 = arith.constant 0 : index
    %c0_16 = arith.constant 0 : index
    %30 = vector.load %arg3[%c0_14, %c0_15, %c0_16] : memref<3x1x128xf32, #tpu.memory_space<vmem>>, vector<1x1x128xf32>
    %31 = vector.shape_cast %30 : vector<1x1x128xf32> to vector<1x128xf32>
    %c3 = arith.constant 3 : index
    %32 = memref.load %arg1[%c3] : memref<9xf32, #tpu.memory_space<smem>>
    %33 = vector.broadcast %32 : f32 to vector<1x128xf32>
    %34 = arith.mulf %31, %33 : vector<1x128xf32>
    %c1_17 = arith.constant 1 : index
    %c0_18 = arith.constant 0 : index
    %c0_19 = arith.constant 0 : index
    %35 = vector.load %arg3[%c1_17, %c0_18, %c0_19] : memref<3x1x128xf32, #tpu.memory_space<vmem>>, vector<1x1x128xf32>
    %36 = vector.shape_cast %35 : vector<1x1x128xf32> to vector<1x128xf32>
    %c4 = arith.constant 4 : index
    %37 = memref.load %arg1[%c4] : memref<9xf32, #tpu.memory_space<smem>>
    %38 = vector.broadcast %37 : f32 to vector<1x128xf32>
    %39 = arith.mulf %36, %38 : vector<1x128xf32>
    %40 = arith.addf %34, %39 : vector<1x128xf32>
    %c2_20 = arith.constant 2 : index
    %c0_21 = arith.constant 0 : index
    %c0_22 = arith.constant 0 : index
    %41 = vector.load %arg3[%c2_20, %c0_21, %c0_22] : memref<3x1x128xf32, #tpu.memory_space<vmem>>, vector<1x1x128xf32>
    %42 = vector.shape_cast %41 : vector<1x1x128xf32> to vector<1x128xf32>
    %c5 = arith.constant 5 : index
    %43 = memref.load %arg1[%c5] : memref<9xf32, #tpu.memory_space<smem>>
    %44 = vector.broadcast %43 : f32 to vector<1x128xf32>
    %45 = arith.mulf %42, %44 : vector<1x128xf32>
    %46 = arith.addf %40, %45 : vector<1x128xf32>
    %c1_23 = arith.constant 1 : index
    %47 = memref.load %arg2[%c1_23] : memref<3xf32, #tpu.memory_space<smem>>
    %48 = vector.broadcast %47 : f32 to vector<1x128xf32>
    %49 = arith.addf %46, %48 : vector<1x128xf32>
    %cst_24 = arith.constant 0.000000e+00 : f32
    %50 = vector.broadcast %cst_24 : f32 to vector<1x128xf32>
    %51 = arith.subf %50, %49 : vector<1x128xf32>
    %52 = math.exp %51 : vector<1x128xf32>
    %cst_25 = arith.constant 1.000000e+00 : f32
    %53 = vector.broadcast %cst_25 : f32 to vector<1x128xf32>
    %54 = arith.addf %53, %52 : vector<1x128xf32>
    %55 = tpu.reciprocal %54 : vector<1x128xf32> -> vector<1x128xf32>
    %56 = arith.mulf %49, %55 : vector<1x128xf32>
    %c1_26 = arith.constant 1 : index
    %c0_27 = arith.constant 0 : index
    %c0_28 = arith.constant 0 : index
    %57 = vector.load %arg4[%c1_26, %c0_27, %c0_28] : memref<3x1x128xf32, #tpu.memory_space<vmem>>, vector<1x1x128xf32>
    %58 = vector.shape_cast %57 : vector<1x1x128xf32> to vector<1x128xf32>
    %59 = vector.shape_cast %56 : vector<1x128xf32> to vector<1x1x128xf32>
    tpu.vector_store %arg4[%c1_26, %c0_27, %c0_28], %59 {strides = array<i32>} : memref<3x1x128xf32, #tpu.memory_space<vmem>>, vector<1x1x128xf32>,
    %c0_29 = arith.constant 0 : index
    %c0_30 = arith.constant 0 : index
    %c0_31 = arith.constant 0 : index
    %60 = vector.load %arg3[%c0_29, %c0_30, %c0_31] : memref<3x1x128xf32, #tpu.memory_space<vmem>>, vector<1x1x128xf32>
    %61 = vector.shape_cast %60 : vector<1x1x128xf32> to vector<1x128xf32>
    %c6 = arith.constant 6 : index
    %62 = memref.load %arg1[%c6] : memref<9xf32, #tpu.memory_space<smem>>
    %63 = vector.broadcast %62 : f32 to vector<1x128xf32>
    %64 = arith.mulf %61, %63 : vector<1x128xf32>
    %c1_32 = arith.constant 1 : index
    %c0_33 = arith.constant 0 : index
    %c0_34 = arith.constant 0 : index
    %65 = vector.load %arg3[%c1_32, %c0_33, %c0_34] : memref<3x1x128xf32, #tpu.memory_space<vmem>>, vector<1x1x128xf32>
    %66 = vector.shape_cast %65 : vector<1x1x128xf32> to vector<1x128xf32>
    %c7 = arith.constant 7 : index
    %67 = memref.load %arg1[%c7] : memref<9xf32, #tpu.memory_space<smem>>
    %68 = vector.broadcast %67 : f32 to vector<1x128xf32>
    %69 = arith.mulf %66, %68 : vector<1x128xf32>
    %70 = arith.addf %64, %69 : vector<1x128xf32>
    %c2_35 = arith.constant 2 : index
    %c0_36 = arith.constant 0 : index
    %c0_37 = arith.constant 0 : index
    %71 = vector.load %arg3[%c2_35, %c0_36, %c0_37] : memref<3x1x128xf32, #tpu.memory_space<vmem>>, vector<1x1x128xf32>
    %72 = vector.shape_cast %71 : vector<1x1x128xf32> to vector<1x128xf32>
    %c8 = arith.constant 8 : index
    %73 = memref.load %arg1[%c8] : memref<9xf32, #tpu.memory_space<smem>>
    %74 = vector.broadcast %73 : f32 to vector<1x128xf32>
    %75 = arith.mulf %72, %74 : vector<1x128xf32>
    %76 = arith.addf %70, %75 : vector<1x128xf32>
    %c2_38 = arith.constant 2 : index
    %77 = memref.load %arg2[%c2_38] : memref<3xf32, #tpu.memory_space<smem>>
    %78 = vector.broadcast %77 : f32 to vector<1x128xf32>
    %79 = arith.addf %76, %78 : vector<1x128xf32>
    %cst_39 = arith.constant 0.000000e+00 : f32
    %80 = vector.broadcast %cst_39 : f32 to vector<1x128xf32>
    %81 = arith.subf %80, %79 : vector<1x128xf32>
    %82 = math.exp %81 : vector<1x128xf32>
    %cst_40 = arith.constant 1.000000e+00 : f32
    %83 = vector.broadcast %cst_40 : f32 to vector<1x128xf32>
    %84 = arith.addf %83, %82 : vector<1x128xf32>
    %85 = tpu.reciprocal %84 : vector<1x128xf32> -> vector<1x128xf32>
    %86 = arith.mulf %79, %85 : vector<1x128xf32>
    %c2_41 = arith.constant 2 : index
    %c0_42 = arith.constant 0 : index
    %c0_43 = arith.constant 0 : index
    %87 = vector.load %arg4[%c2_41, %c0_42, %c0_43] : memref<3x1x128xf32, #tpu.memory_space<vmem>>, vector<1x1x128xf32>
    %88 = vector.shape_cast %87 : vector<1x1x128xf32> to vector<1x128xf32>
    %89 = vector.shape_cast %86 : vector<1x128xf32> to vector<1x1x128xf32>
    tpu.vector_store %arg4[%c2_41, %c0_42, %c0_43], %89 {strides = array<i32>} : memref<3x1x128xf32, #tpu.memory_space<vmem>>, vector<1x1x128xf32>,
    return
  }
  func.func @transform_0(%arg0: i32) -> i32 {
    %c0_i32 = arith.constant 0 : i32
    %c0_i32_0 = arith.constant 0 : i32
    return %c0_i32 : i32
  }
  func.func @transform_1(%arg0: i32) -> i32 {
    %c0_i32 = arith.constant 0 : i32
    %c0_i32_0 = arith.constant 0 : i32
    return %c0_i32 : i32
  }
  func.func @transform_2(%arg0: i32) -> (i32, i32, i32) {
    %c0_i32 = arith.constant 0 : i32
    %c0_i32_0 = arith.constant 0 : i32
    %c0_i32_1 = arith.constant 0 : i32
    return %c0_i32, %arg0, %c0_i32_0 : i32, i32, i32
  }
  func.func @transform_3(%arg0: i32) -> (i32, i32, i32) {
    %c0_i32 = arith.constant 0 : i32
    %c0_i32_0 = arith.constant 0 : i32
    %c0_i32_1 = arith.constant 0 : i32
    return %c0_i32, %arg0, %c0_i32_0 : i32, i32, i32
  }
}

</mosaic_0001>

<llo_original>
// kernel: tpu_custom_call.1
$region0: #{tpu_custom_call.1}
  #allocation0 [shape = 'u32[]', space=smem, size = 0x4, offset = 0x4, fixed_abs, tag = 'smem constant byte address 0x4 - core index']
  #allocation1 [shape = 'u32[72,128]{1,0:T(1,128)}', space=vmem, size = 0x9000, scoped, tag = 'internal scratch']
  %s0 = inlined_call_operand.hbm [shape: f32[9], index: 0, kind: input, shape index: {}]
  %s1 = inlined_call_operand.hbm [shape: f32[3], index: 1, kind: input, shape index: {}]
  %s2 = inlined_call_operand.hbm [shape: f32[3,1,128], index: 2, kind: input, shape index: {}]
  %s3 = inlined_call_operand.hbm [shape: f32[3,1,128], index: 3, kind: output, shape index: {}]
  %s4 = sld [smem:[#allocation0]]
  $region34: #{tpu_custom_call.1} parent=0
    _
  %s6 = ssub.s32 1, %s4
  %s7 = scalar_select 0, %s6, %s4
  $region1: #{tpu_custom_call.1} parent=0
    #allocation2 [shape = 'u8[512]{0}', space=smem, size = 0x200, scoped, tag = 'input window, operand 0, single buffered']
    #allocation3 [shape = 's32[1]{0}', space=sflag, size = 0x4, scoped, tag = 'scoped memory for tpu_custom_call.1']
    #allocation4 [shape = 's32[1]{0}', space=sflag, size = 0x4, scoped, tag = 'scoped memory for tpu_custom_call.1']
    #allocation5 [shape = 's32[1]{0}', space=sflag, size = 0x4, scoped, tag = 'scoped memory for tpu_custom_call.1']
    #allocation6 [shape = 'u8[512]{0}', space=smem, size = 0x200, scoped, tag = 'input window, operand 1, single buffered']
    #allocation7 [shape = 's32[1]{0}', space=sflag, size = 0x4, scoped, tag = 'scoped memory for tpu_custom_call.1']
    #allocation8 [shape = 'u8[1536]{0}', space=vmem, size = 0x800, scoped, tag = 'input window, operand 2, single buffered']
    #allocation9 [shape = 'u8[1536]{0}', space=vmem, size = 0x800, scoped, tag = 'output window, operand 0, single buffered']
    %8 = vsyncpa [#allocation5], 0
    %9 = vsyncpa [#allocation7], 0
    %10 = vsyncpa [#allocation3], 0
    %11 = vsyncpa [#allocation4], 0
    // Predicated region
    $region2: #{tpu_custom_call.1} parent=1 // pred_check
      _
    $region3: #{tpu_custom_call.1} parent=1 // pred_check_branch
      %13 = sbr.rel (0) target = $region5
    $region4: #{tpu_custom_call.1} parent=1 // pred_region
      %15 = vsyncadd [#allocation5], 0
      %s17 = sshll.u32 %s0, 4
      %s18 = int_to_ptr.hbm [resolvable:$true] %s17
      %20 = dma.hbm_to_smem %s18, 16, [#allocation2], [#allocation5]
    $region5: #{tpu_custom_call.1} parent=1 // pred_fallthru
      _
    // Predicated region
    $region6: #{tpu_custom_call.1} parent=1 // pred_check
      _
    $region7: #{tpu_custom_call.1} parent=1 // pred_check_branch
      %22 = sbr.rel (0) target = $region9
    $region8: #{tpu_custom_call.1} parent=1 // pred_region
      %24 = vsyncadd [#allocation7], 0
      %s26 = sshll.u32 %s1, 4
      %s27 = int_to_ptr.hbm [resolvable:$true] %s26
      %29 = dma.hbm_to_smem %s27, 16, [#allocation6], [#allocation7]
    $region9: #{tpu_custom_call.1} parent=1 // pred_fallthru
      _
    // Predicated region
    $region10: #{tpu_custom_call.1} parent=1 // pred_check
      _
    $region11: #{tpu_custom_call.1} parent=1 // pred_check_branch
      %31 = sbr.rel (0) target = $region13
    $region12: #{tpu_custom_call.1} parent=1 // pred_region
      %33 = vsyncadd [#allocation3], 0
      %s34 = sshll.u32 %s2, 4
      %s35 = int_to_ptr.hbm [resolvable:$true] %s34
      %s36 = sshll.u32 [#allocation8], 4
      %s37 = int_to_ptr.vmem [resolvable:$true] %s36
      %42 = dma.hbm_to_vmem [thread:$0]  %s35, 48, %s37, [#allocation3], 16, 16, 1
    $region13: #{tpu_custom_call.1} parent=1 // pred_fallthru
      _
    // Predicated region
    $region14: #{tpu_custom_call.1} parent=1 // pred_check
      _
    $region15: #{tpu_custom_call.1} parent=1 // pred_check_branch
      %44 = sbr.rel (0) target = $region17
    $region16: #{tpu_custom_call.1} parent=1 // pred_region
      %46 = dma.done [#allocation5], 16
    $region17: #{tpu_custom_call.1} parent=1 // pred_fallthru
      _
    // Predicated region
    $region18: #{tpu_custom_call.1} parent=1 // pred_check
      _
    $region19: #{tpu_custom_call.1} parent=1 // pred_check_branch
      %48 = sbr.rel (0) target = $region21
    $region20: #{tpu_custom_call.1} parent=1 // pred_region
      %50 = dma.done [#allocation7], 16
    $region21: #{tpu_custom_call.1} parent=1 // pred_fallthru
      _
    // Predicated region
    $region22: #{tpu_custom_call.1} parent=1 // pred_check
      _
    $region23: #{tpu_custom_call.1} parent=1 // pred_check_branch
      %52 = sbr.rel (0) target = $region25
    $region24: #{tpu_custom_call.1} parent=1 // pred_region
      %54 = dma.done [#allocation3], 48
    $region25: #{tpu_custom_call.1} parent=1 // pred_fallthru
      _
    %55 = sfence
    %v56 = vld [vmem:[#allocation8] sm:$0x1]
    %s57 = sld [smem:[#allocation2]]
    %v58 = vstv %s57
    %v59 = vmul.f32 %v56, %v58
    %s60 = scalar_lea.vmem [#allocation8], 1
    %v61 = vld [vmem:[%s60] sm:$0x1]
    %s62 = sld [smem:[#allocation2 + $0x1]]
    %v63 = vstv %s62
    %v64 = vmul.f32 %v61, %v63
    %v65 = vadd.f32 %v59, %v64
    %s66 = scalar_lea.vmem [#allocation8], 2
    %v67 = vld [vmem:[%s66] sm:$0x1]
    %s68 = sld [smem:[#allocation2 + $0x2]]
    %v69 = vstv %s68
    %v70 = vmul.f32 %v67, %v69
    %v71 = vadd.f32 %v65, %v70
    %s72 = sld [smem:[#allocation6]]
    %v73 = vstv %s72
    %v74 = vadd.f32 %v71, %v73
    %v75 = vsub.f32 0.0, %v74
    %v76 = vmul.f32 %v75, 1.442695
    %v77 = vpow.pop %v76
    %v78 = vadd.f32 %v77, 1.0
    %v79 = vrcp.pop %v78
    %v80 = vmul.f32 %v78, %v79
    %v81 = vsub.f32 1.0, %v80
    %v82 = vmul.f32 %v79, %v81
    %v83 = vadd.f32 %v79, %v82
    %vm84 = vweird.f32 %v78
    %vm85 = vweird.f32 %v79
    %vm86 = vmor %vm84, %vm85
    %v87 = vsel %vm86, %v79, %v83
    %v88 = vand.u32 2147483647, %v78
    %vm89 = vcmp.eq.f32.partialorder %v88, 8.507059e+37
    %v90 = vand.u32 %v78, 2147483648
    %v91 = vor.u32 1.1754944e-38, %v90
    %v92 = vsel %vm89, %v91, %v87
    %v93 = vmul.f32 %v74, %v92
    %94 = vst [vmem:[#allocation9] sm:$0x1] %v93
    %v95 = vld [vmem:[#allocation8] sm:$0x1]
    %s96 = sld [smem:[#allocation2 + $0x3]]
    %v97 = vstv %s96
    %v98 = vmul.f32 %v95, %v97
    %v99 = vld [vmem:[%s60] sm:$0x1]
    %s100 = sld [smem:[#allocation2 + $0x4]]
    %v101 = vstv %s100
    %v102 = vmul.f32 %v99, %v101
    %v103 = vadd.f32 %v98, %v102
    %v104 = vld [vmem:[%s66] sm:$0x1]
    %s105 = sld [smem:[#allocation2 + $0x5]]
    %v106 = vstv %s105
    %v107 = vmul.f32 %v104, %v106
    %v108 = vadd.f32 %v103, %v107
    %s109 = sld [smem:[#allocation6 + $0x1]]
    %v110 = vstv %s109
    %v111 = vadd.f32 %v108, %v110
    %v112 = vsub.f32 0.0, %v111
    %v113 = vmul.f32 %v112, 1.442695
    %v114 = vpow.pop %v113
    %v115 = vadd.f32 %v114, 1.0
    %v116 = vrcp.pop %v115
    %v117 = vmul.f32 %v115, %v116
    %v118 = vsub.f32 1.0, %v117
    %v119 = vmul.f32 %v116, %v118
    %v120 = vadd.f32 %v116, %v119
    %vm121 = vweird.f32 %v115
    %vm122 = vweird.f32 %v116
    %vm123 = vmor %vm121, %vm122
    %v124 = vsel %vm123, %v116, %v120
    %v125 = vand.u32 2147483647, %v115
    %vm126 = vcmp.eq.f32.partialorder %v125, 8.507059e+37
    %v127 = vand.u32 %v115, 2147483648
    %v128 = vor.u32 1.1754944e-38, %v127
    %v129 = vsel %vm126, %v128, %v124
    %v130 = vmul.f32 %v111, %v129
    %s131 = scalar_lea.vmem [#allocation9], 1
    %132 = vst [vmem:[%s131] sm:$0x1] %v130
    %v133 = vld [vmem:[#allocation8] sm:$0x1]
    %s134 = sld [smem:[#allocation2 + $0x6]]
    %v135 = vstv %s134
    %v136 = vmul.f32 %v133, %v135
    %v137 = vld [vmem:[%s60] sm:$0x1]
    %s138 = sld [smem:[#allocation2 + $0x7]]
    %v139 = vstv %s138
    %v140 = vmul.f32 %v137, %v139
    %v141 = vadd.f32 %v136, %v140
    %v142 = vld [vmem:[%s66] sm:$0x1]
    %s143 = sld [smem:[#allocation2 + $0x8]]
    %v144 = vstv %s143
    %v145 = vmul.f32 %v142, %v144
    %v146 = vadd.f32 %v141, %v145
    %s147 = sld [smem:[#allocation6 + $0x2]]
    %v148 = vstv %s147
    %v149 = vadd.f32 %v146, %v148
    %v150 = vsub.f32 0.0, %v149
    %v151 = vmul.f32 %v150, 1.442695
    %v152 = vpow.pop %v151
    %v153 = vadd.f32 %v152, 1.0
    %v154 = vrcp.pop %v153
    %v155 = vmul.f32 %v153, %v154
    %v156 = vsub.f32 1.0, %v155
    %v157 = vmul.f32 %v154, %v156
    %v158 = vadd.f32 %v154, %v157
    %vm159 = vweird.f32 %v153
    %vm160 = vweird.f32 %v154
    %vm161 = vmor %vm159, %vm160
    %v162 = vsel %vm161, %v154, %v158
    %v163 = vand.u32 2147483647, %v153
    %vm164 = vcmp.eq.f32.partialorder %v163, 8.507059e+37
    %v165 = vand.u32 %v153, 2147483648
    %v166 = vor.u32 1.1754944e-38, %v165
    %v167 = vsel %vm164, %v166, %v162
    %v168 = vmul.f32 %v149, %v167
    %s169 = scalar_lea.vmem [#allocation9], 2
    %170 = vst [vmem:[%s169] sm:$0x1] %v168
    // Predicated region
    $region26: #{tpu_custom_call.1} parent=1 // pred_check
      _
    $region27: #{tpu_custom_call.1} parent=1 // pred_check_branch
      %172 = sbr.rel (0) target = $region29
    $region28: #{tpu_custom_call.1} parent=1 // pred_region
      %174 = vsyncadd [#allocation4], 0
      %s175 = sshll.u32 [#allocation9], 4
      %s176 = int_to_ptr.vmem [resolvable:$true] %s175
      %s177 = sshll.u32 %s3, 4
      %s178 = int_to_ptr.hbm [resolvable:$true] %s177
      %183 = dma.vmem_to_hbm [thread:$0]  %s176, 48, %s178, [#allocation4], 16, 16, 1
    $region29: #{tpu_custom_call.1} parent=1 // pred_fallthru
      _
    // Predicated region
    $region30: #{tpu_custom_call.1} parent=1 // pred_check
      _
    $region31: #{tpu_custom_call.1} parent=1 // pred_check_branch
      %185 = sbr.rel (0) target = $region33
    $region32: #{tpu_custom_call.1} parent=1 // pred_region
      %187 = dma.done [#allocation4], 48
    $region33: #{tpu_custom_call.1} parent=1 // pred_fallthru
      _
    %188 = vsyncpa [#allocation3], 1
    %189 = vsyncpa [#allocation4], 1
    %190 = vsyncpa [#allocation5], 1
    %191 = vsyncpa [#allocation7], 1

</llo_original>
